<compile_context>
chip_gen: v5e
topology: v5e:2x2
jax: 0.10.0
libtpu: 0.0.40
codegen_flags: <defaults>
</compile_context>

<pallas_src>
import jax
import jax.numpy as jnp
from jax.experimental import pallas as pl
from jax.experimental.pallas import tpu as pltpu


# ----------------------------------------------------------------------------
# Pallas kernel: whole-window slice copy + completeness-violation count.
# ----------------------------------------------------------------------------
def _encode_action_sequence_kernel(a_ref, gt_ref, bad_ref):
    L, _ = a_ref.shape
    out_rows, out_cols = gt_ref.shape
    # ground_truth = a[1:-1, 1:] : one whole-window copy, single block,
    # zero per-step grid overhead.
    gt_ref[...] = a_ref[pl.ds(1, out_rows), pl.ds(1, out_cols)]
    # completeness check: count entries of the terminal row that are != -1.
    last_row = a_ref[pl.ds(L - 1, 1), :]                      # (1, C)
    bad_ref[...] = jnp.sum((last_row != jnp.int32(-1)).astype(jnp.int32),
                           axis=1, keepdims=True)             # (1, 1)


def encode_action_sequence(a: jax.Array) -> jax.Array:
    """JAX/Pallas equivalent of EncodeActionSequence.forward, given
    a = action_sequence_encoder.encode_action(action_sequence, reference)."""
    if a is None:
        raise RuntimeError("cannot encode ActionSequence")

    L, C = a.shape
    out_rows, out_cols = L - 2, C - 1
    if out_rows <= 0 or out_cols <= 0:
        # Degenerate sequence: nothing for a kernel to do.
        if bool(jnp.any(a[-1, :] != -1)):
            raise RuntimeError("ActionSequence is incomplete")
        return jnp.zeros((max(out_rows, 0), max(out_cols, 0)), a.dtype)

    gt, n_bad = pl.pallas_call(
        _encode_action_sequence_kernel,
        out_shape=(jax.ShapeDtypeStruct((out_rows, out_cols), a.dtype),
                   jax.ShapeDtypeStruct((1, 1), jnp.int32)),
        # No grid: the whole (tiny) table lives in VMEM; one DMA in, one out.
        in_specs=[pl.BlockSpec(memory_space=pltpu.MemorySpace.VMEM)],
        out_specs=(pl.BlockSpec(memory_space=pltpu.MemorySpace.VMEM),
                   pl.BlockSpec(memory_space=pltpu.MemorySpace.VMEM)),
    )(a)

    # Mirrors the original module's host-side `.numpy()` check + raise.
    if int(n_bad[0, 0]) != 0:
        raise RuntimeError("ActionSequence is incomplete")
    return gt


# ----------------------------------------------------------------------------
# Deterministic stand-in for ActionSequenceEncoder.encode_action.
# TODO(synk): the real encode_action walks a symbolic ActionSequence / Token
# list in pure Python (object traversal, no tensor math) -- it has no Pallas
# equivalent, so we synthesize its [seq_len+1, n_cols] int32 output.
# ----------------------------------------------------------------------------
def synth_encode_action(key, seq_len: int, n_cols: int = 4) -> jax.Array:
    L = seq_len + 1
    ids = jax.random.randint(key, (L, n_cols), minval=-1, maxval=50,
                             dtype=jnp.int32)
    # A complete ActionSequence encodes its terminal row as all -1.
    return ids.at[L - 1, :].set(jnp.int32(-1))


# ----------------------------------------------------------------------------
if __name__ == "__main__":
    key = jax.random.PRNGKey(0)

    seq_len = 8   # len(action_sequence)
    n_cols = 4    # feature columns emitted by encode_action

    a = synth_encode_action(key, seq_len, n_cols)          # (9, 4) int32

    gt = encode_action_sequence(a)
    gt = jax.block_until_ready(gt)

    ref = a[1:-1, 1:]
    assert gt.shape == (a.shape[0] - 2, n_cols - 1)
    assert gt.dtype == a.dtype
    assert bool(jnp.all(gt == ref))

    # Incomplete sequence must raise, same as the PyTorch module.
    a_bad = a.at[-1, 0].set(jnp.int32(7))
    raised = False
    try:
        encode_action_sequence(a_bad)
    except RuntimeError:
        raised = True
    assert raised

    print("KERNEL_OK")
</pallas_src>

<mosaic_0001>
module attributes {stable_mosaic.version = 11 : i64} {
  func.func @_encode_action_sequence_kernel(%arg0: memref<9x4xi32, #tpu.memory_space<vmem>>, %arg1: memref<7x3xi32, #tpu.memory_space<vmem>>, %arg2: memref<1x1xi32, #tpu.memory_space<vmem>>) attributes {dimension_semantics = [], scalar_prefetch = 0 : i64, scratch_operands = 0 : i64, tpu.core_type = #tpu.core_type<tc>} {
    %c1 = arith.constant 1 : index
    %c1_0 = arith.constant 1 : index
    %0 = vector.load %arg0[%c1, %c1_0] : memref<9x4xi32, #tpu.memory_space<vmem>>, vector<7x3xi32>
    %c0 = arith.constant 0 : index
    %c0_1 = arith.constant 0 : index
    %1 = vector.load %arg1[%c0, %c0_1] : memref<7x3xi32, #tpu.memory_space<vmem>>, vector<7x3xi32>
    tpu.vector_store %arg1[%c0, %c0_1], %0 {strides = array<i32>} : memref<7x3xi32, #tpu.memory_space<vmem>>, vector<7x3xi32>,
    %c8 = arith.constant 8 : index
    %c0_2 = arith.constant 0 : index
    %2 = vector.load %arg0[%c8, %c0_2] : memref<9x4xi32, #tpu.memory_space<vmem>>, vector<1x4xi32>
    %c-1_i32 = arith.constant -1 : i32
    %3 = vector.broadcast %c-1_i32 : i32 to vector<1x4xi32>
    %4 = arith.cmpi ne, %2, %3 : vector<1x4xi32>
    %5 = arith.extui %4 : vector<1x4xi1> to vector<1x4xi32>
    %cst = arith.constant dense<0> : vector<1xi32>
    %6 = vector.multi_reduction <add>, %5, %cst [1] : vector<1x4xi32> to vector<1xi32>
    %7 = vector.shape_cast %6 : vector<1xi32> to vector<1x1xi32>
    %c0_3 = arith.constant 0 : index
    %c0_4 = arith.constant 0 : index
    %8 = vector.load %arg2[%c0_3, %c0_4] : memref<1x1xi32, #tpu.memory_space<vmem>>, vector<1x1xi32>
    tpu.vector_store %arg2[%c0_3, %c0_4], %7 {strides = array<i32>} : memref<1x1xi32, #tpu.memory_space<vmem>>, vector<1x1xi32>,
    return
  }
}

</mosaic_0001>

<llo_original>
// kernel: tpu_custom_call.1
$region0: #{tpu_custom_call.1}
  #allocation0 [shape = 'u32[]', space=smem, size = 0x4, offset = 0x4, fixed_abs, tag = 'smem constant byte address 0x4 - core index']
  #allocation1 [shape = 'u32[72,128]{1,0:T(1,128)}', space=vmem, size = 0x9000, scoped, tag = 'internal scratch']
  %s0 = inlined_call_operand.vmem [shape: s32[9,4], index: 0, kind: input, shape index: {}]
  %s1 = inlined_call_operand.vmem [shape: s32[7,3], index: 1, kind: output, shape index: {0}]
  %s2 = inlined_call_operand.hbm [shape: s32[1,1], index: 2, kind: output, shape index: {1}]
  %3 = xla_tuple %s1, %s2
  %s4 = sld [smem:[#allocation0]]
  $region22: #{tpu_custom_call.1} parent=0
    _
  %s6 = ssub.s32 1, %s4
  %s7 = scalar_select 0, %s6, %s4
  $region1: #{tpu_custom_call.1} parent=0
    #allocation2 [shape = 'u8[512]{0}', space=vmem, size = 0x400, scoped, tag = 'output window, operand 1, single buffered']
    #allocation3 [shape = 's32[1]{0}', space=sflag, size = 0x4, scoped, tag = 'scoped memory for tpu_custom_call.1']
    %8 = vsyncpa [#allocation3], 0
    // Predicated region
    $region2: #{tpu_custom_call.1} parent=1 // pred_check
      _
    $region3: #{tpu_custom_call.1} parent=1 // pred_check_branch
      %10 = sbr.rel (0) target = $region5
    $region4: #{tpu_custom_call.1} parent=1 // pred_region
      _
    $region5: #{tpu_custom_call.1} parent=1 // pred_fallthru
      _
    %v11 = vld [vmem:[%s0 + $0x1] sm:$0x7f]
    %12 = vrot.lane.b32.xlu0 %v11, 127
    %v13 = vpop.permute.xlu0 %12
    %vm14 = vcmask 22528
    %15 = vst.msk [vmem:[%s1] sm:$0x7f] %vm14, %v13
    %v16 = vld [vmem:[%s0 + $0x8] sm:$0x1]
    %vm17 = vcmp.ne.s32.totalorder %v16, 4294967295
    %v18 = vsel %vm17, 1, 0
    %vm19 = vcmask 24576
    %v20 = vsel %vm19, %v18, 0
    %v21 = vand.u32 %v20, 65535
    %v22 = vshrl.u32 %v20, 16
    %v23 = vcvt.s32.f32 %v21
    %v24 = vcvt.s32.f32 %v22
    %25 = vadd.xlane.f32.xlu0 %v23
    %v26 = vpop.xlane.xlu0 %25
    %27 = vadd.xlane.f32.xlu0 %v24
    %v28 = vpop.xlane.xlu0 %27
    %v29 = vcvt.f32.s32 %v26
    %v30 = vcvt.f32.s32 %v28
    %v31 = vshll.u32 %v30, 16
    %v32 = vadd.s32 %v31, %v29
    %vm33 = vcmask 0
    %34 = vst.msk [vmem:[#allocation2] sm:$0x1] %vm33, %v32
    // Predicated region
    $region6: #{tpu_custom_call.1} parent=1 // pred_check
      _
    $region7: #{tpu_custom_call.1} parent=1 // pred_check_branch
      %36 = sbr.rel (0) target = $region9
    $region8: #{tpu_custom_call.1} parent=1 // pred_region
      _
    $region9: #{tpu_custom_call.1} parent=1 // pred_fallthru
      _
    // Predicated region
    $region10: #{tpu_custom_call.1} parent=1 // pred_check
      _
    $region11: #{tpu_custom_call.1} parent=1 // pred_check_branch
      %38 = sbr.rel (0) target = $region13
    $region12: #{tpu_custom_call.1} parent=1 // pred_region
      %40 = vsyncadd [#allocation3], 0
      %s42 = sshll.u32 [#allocation2], 4
      %s43 = int_to_ptr.vmem [resolvable:$true] %s42
      %s44 = sshll.u32 %s2, 4
      %s45 = int_to_ptr.hbm [resolvable:$true] %s44
      %47 = dma.vmem_to_hbm [thread:$0]  %s43, 16, %s45, [#allocation3]
    $region13: #{tpu_custom_call.1} parent=1 // pred_fallthru
      _
    // Predicated region
    $region14: #{tpu_custom_call.1} parent=1 // pred_check
      _
    $region15: #{tpu_custom_call.1} parent=1 // pred_check_branch
      %49 = sbr.rel (0) target = $region17
    $region16: #{tpu_custom_call.1} parent=1 // pred_region
      _
    $region17: #{tpu_custom_call.1} parent=1 // pred_fallthru
      _
    // Predicated region
    $region18: #{tpu_custom_call.1} parent=1 // pred_check
      _
    $region19: #{tpu_custom_call.1} parent=1 // pred_check_branch
      %51 = sbr.rel (0) target = $region21
    $region20: #{tpu_custom_call.1} parent=1 // pred_region
      %53 = dma.done [#allocation3], 16
    $region21: #{tpu_custom_call.1} parent=1 // pred_fallthru
      _
    %54 = vsyncpa [#allocation3], 1

</llo_original>
